<compile_context>
chip_gen: v7x
topology: tpu7x:2x2x1
jax: 0.10.0
libtpu: 0.0.40
codegen_flags: <defaults>
</compile_context>

<pallas_src>
import functools

import jax
import jax.numpy as jnp
from jax.experimental import pallas as pl
from jax.experimental.pallas import tpu as pltpu


def bottleneck_kernel(x_ref, s1_ref, b1_ref, w1_ref, b2_ref, w2_ref, mask_ref,
                      out_ref, big_ref, *, W):
    """One lane tile (a whole number of images) per grid step.

    x_ref   : (C, TILE)       input, channels on sublanes / merged N*HW on lanes
    s1/b1   : (C, 1)          folded BN1 scale / bias (f32)
    w1_ref  : (Cmid, C)       1x1 conv weight with BN2 scale folded in (bf16)
    b2_ref  : (Cmid, 1)       folded BN2 bias (f32)
    w2_ref  : (G, 9*Cmid)     3x3 conv weight, tap-major (bf16)
    mask_ref: (9, TILE)       per-tap {0,1} edge masks (f32, lane-position only)
    out_ref : (G, TILE)       ONLY the new growth channels (concat in wrapper)
    big_ref : (9*Cmid, TILE)  bf16 VMEM scratch holding the 9 shifted taps
    """
    Cmid = w1_ref.shape[0]
    TILE = x_ref.shape[1]

    # BN1 (folded affine, eval mode) + ReLU in f32.
    h1 = jnp.maximum(x_ref[...] * s1_ref[...] + b1_ref[...], 0.0)      # (C, TILE)

    # 1x1 conv (BN2 scale pre-folded into the weight): bf16 MXU matmul.
    t = jnp.dot(w1_ref[...], h1.astype(jnp.bfloat16),
                preferred_element_type=jnp.float32)                    # (Cmid, TILE)

    # BN2 bias + ReLU.
    h2 = jnp.maximum(t + b2_ref[...], 0.0)                             # (Cmid, TILE) f32

    # 3x3 conv (padding=1) as ONE fused MXU matmul: each tap (dy, dx) is a
    # cyclic lane roll (XLU) times a precomputed {0,1} edge mask.  Rolls that
    # wrap across image / tile boundaries land only on rows/cols the mask
    # already zeroes, so semantics match SAME padding.
    k = 0
    for dy in (-1, 0, 1):
        for dx in (-1, 0, 1):
            s = dy * W + dx                                  # source pixel offset
            tap = pltpu.roll(h2, (-s) % TILE, axis=1) if s else h2
            if s:
                tap = tap * mask_ref[pl.ds(k, 1), :]
            big_ref[pl.ds(k * Cmid, Cmid), :] = tap.astype(jnp.bfloat16)
            k += 1

    # (G, 9*Cmid) @ (9*Cmid, TILE) -> (G, TILE); lane-dense store of G channels.
    y = jnp.dot(w2_ref[...], big_ref[...], preferred_element_type=jnp.float32)
    out_ref[...] = y.astype(out_ref.dtype)


def bottleneck_forward(x_nchw, params, eps=1e-5):
    (g1, be1, rm1, rv1, w1, g2, be2, rm2, rv2, w2) = params
    N, C, H, W = x_nchw.shape
    Cmid = w1.shape[0]           # (Cmid, C, 1, 1)
    G = w2.shape[0]              # (G, Cmid, 3, 3)
    HW = H * W

    # Fold BN into scale/bias (eval mode); fold BN2 scale into the 1x1 weight.
    s1 = g1 / jnp.sqrt(rv1 + eps)
    b1 = be1 - rm1 * s1
    s2 = g2 / jnp.sqrt(rv2 + eps)
    b2 = be2 - rm2 * s2

    w1_mat = (s2[:, None] * w1[:, :, 0, 0]).astype(jnp.bfloat16)            # (Cmid, C)
    w2_mat = (jnp.transpose(w2, (0, 2, 3, 1))
              .reshape(G, 9 * Cmid).astype(jnp.bfloat16))                    # (G, 9*Cmid)

    # Merge batch into the lane axis: (C, N*HW), images contiguous.
    x_flat = jnp.transpose(x_nchw, (1, 0, 2, 3)).reshape(C, N * HW)

    # Lane tiles are whole images: keep >= 2 tiles when N allows (v7x has two
    # TensorCores) but otherwise go as wide as possible to amortize the
    # ~0.35 us/step grid overhead on the single-TC v5e/v6e.
    ipt = max(1, min(N, 2048 // HW))
    while ipt > 1 and N // ipt < 2:
        ipt -= 1
    while N % ipt != 0:
        ipt -= 1
    TILE = ipt * HW
    num_tiles = N // ipt

    # Nine {0,1} edge masks, built once from a (HW,) iota (lane-position only),
    # tiled to the lane-tile width.
    pix = jnp.arange(HW, dtype=jnp.int32)
    hh, ww = pix // W, pix % W
    rows = []
    for dy in (-1, 0, 1):
        for dx in (-1, 0, 1):
            m = jnp.ones((HW,), jnp.float32)
            if dy == -1:
                m = m * (hh >= 1)
            elif dy == 1:
                m = m * (hh <= H - 2)
            if dx == -1:
                m = m * (ww >= 1)
            elif dx == 1:
                m = m * (ww <= W - 2)
            rows.append(m)
    mask = jnp.tile(jnp.stack(rows, axis=0), (1, ipt))                       # (9, TILE)

    kernel = functools.partial(bottleneck_kernel, W=W)

    y_flat = pl.pallas_call(
        kernel,
        out_shape=jax.ShapeDtypeStruct((G, N * HW), x_nchw.dtype),
        grid_spec=pltpu.PrefetchScalarGridSpec(
            num_scalar_prefetch=0,
            grid=(num_tiles,),
            in_specs=[
                pl.BlockSpec((C, TILE), lambda j: (0, j)),
                pl.BlockSpec((C, 1), lambda j: (0, 0)),
                pl.BlockSpec((C, 1), lambda j: (0, 0)),
                pl.BlockSpec((Cmid, C), lambda j: (0, 0)),
                pl.BlockSpec((Cmid, 1), lambda j: (0, 0)),
                pl.BlockSpec((G, 9 * Cmid), lambda j: (0, 0)),
                pl.BlockSpec((9, TILE), lambda j: (0, 0)),
            ],
            out_specs=pl.BlockSpec((G, TILE), lambda j: (0, j)),
            scratch_shapes=[pltpu.VMEM((9 * Cmid, TILE), jnp.bfloat16)],
        ),
        compiler_params=pltpu.CompilerParams(
            dimension_semantics=("parallel",)),
    )(x_flat, s1.reshape(C, 1), b1.reshape(C, 1), w1_mat,
      b2.reshape(Cmid, 1), w2_mat, mask)

    # Passthrough channels never touch the kernel: plain XLA channel concat.
    y = jnp.transpose(y_flat.reshape(G, N, H, W), (1, 0, 2, 3))
    return jnp.concatenate([x_nchw, y], axis=1)


def reference_forward(x, params, eps=1e-5):
    """Pure-JAX f32 reference (eval-mode BN, padding=1 on the 3x3 conv)."""
    (g1, be1, rm1, rv1, w1, g2, be2, rm2, rv2, w2) = params

    def bn(h, g, be, rm, rv):
        return ((h - rm[None, :, None, None]) / jnp.sqrt(rv[None, :, None, None] + eps)
                * g[None, :, None, None] + be[None, :, None, None])

    dn = ('NCHW', 'OIHW', 'NCHW')
    h = jnp.maximum(bn(x, g1, be1, rm1, rv1), 0.0)
    h = jax.lax.conv_general_dilated(h, w1, (1, 1), 'VALID', dimension_numbers=dn)
    h = jnp.maximum(bn(h, g2, be2, rm2, rv2), 0.0)
    h = jax.lax.conv_general_dilated(h, w2, (1, 1), ((1, 1), (1, 1)),
                                     dimension_numbers=dn)
    return jnp.concatenate([x, h], axis=1)


if __name__ == "__main__":
    nChannels, growthRate = 4, 4
    interChannels = 4 * growthRate
    N, H, W = 2, 16, 16

    key = jax.random.PRNGKey(0)
    ks = jax.random.split(key, 11)

    # Deterministic synthetic parameters (torch shape conventions).
    g1 = jax.random.uniform(ks[0], (nChannels,), jnp.float32, 0.5, 1.5)
    be1 = 0.1 * jax.random.normal(ks[1], (nChannels,), jnp.float32)
    rm1 = 0.1 * jax.random.normal(ks[2], (nChannels,), jnp.float32)
    rv1 = jax.random.uniform(ks[3], (nChannels,), jnp.float32, 0.5, 1.5)
    w1 = 0.2 * jax.random.normal(ks[4], (interChannels, nChannels, 1, 1), jnp.float32)
    g2 = jax.random.uniform(ks[5], (interChannels,), jnp.float32, 0.5, 1.5)
    be2 = 0.1 * jax.random.normal(ks[6], (interChannels,), jnp.float32)
    rm2 = 0.1 * jax.random.normal(ks[7], (interChannels,), jnp.float32)
    rv2 = jax.random.uniform(ks[8], (interChannels,), jnp.float32, 0.5, 1.5)
    w2 = 0.2 * jax.random.normal(ks[9], (growthRate, interChannels, 3, 3), jnp.float32)
    params = (g1, be1, rm1, rv1, w1, g2, be2, rm2, rv2, w2)

    x = jax.random.normal(ks[10], (N, nChannels, H, W), jnp.float32)

    out = jax.block_until_ready(bottleneck_forward(x, params))
    assert out.shape == (N, nChannels + growthRate, H, W), out.shape

    ref = jax.block_until_ready(reference_forward(x, params))
    # Tolerance loosened vs the f32-only version because MXU operands are bf16.
    assert jnp.allclose(out, ref, atol=5e-2, rtol=5e-2), float(jnp.max(jnp.abs(out - ref)))

    print("KERNEL_OK")
</pallas_src>

<mosaic_0001>
module attributes {stable_mosaic.version = 11 : i64} {
  func.func @bottleneck_kernel(%arg0: i32, %arg1: memref<4x256xf32, #tpu.memory_space<vmem>>, %arg2: memref<4x1xf32, #tpu.memory_space<vmem>>, %arg3: memref<4x1xf32, #tpu.memory_space<vmem>>, %arg4: memref<16x4xbf16, #tpu.memory_space<vmem>>, %arg5: memref<16x1xf32, #tpu.memory_space<vmem>>, %arg6: memref<4x144xbf16, #tpu.memory_space<vmem>>, %arg7: memref<9x256xf32, #tpu.memory_space<vmem>>, %arg8: memref<4x256xf32, #tpu.memory_space<vmem>>, %arg9: memref<144x256xbf16, #tpu.memory_space<vmem>>) attributes {dimension_semantics = [#tpu.dimension_semantics<parallel>], iteration_bounds = array<i64: 2>, scalar_prefetch = 0 : i64, scratch_operands = 1 : i64, tpu.core_type = #tpu.core_type<tc>, window_params = [{transform_indices = @transform_0, window_bounds = array<i64: 4, 256>}, {pipeline_mode = #tpu.pipeline_mode<synchronous>, transform_indices = @transform_1, window_bounds = array<i64: 4, 1>}, {pipeline_mode = #tpu.pipeline_mode<synchronous>, transform_indices = @transform_2, window_bounds = array<i64: 4, 1>}, {pipeline_mode = #tpu.pipeline_mode<synchronous>, transform_indices = @transform_3, window_bounds = array<i64: 16, 4>}, {pipeline_mode = #tpu.pipeline_mode<synchronous>, transform_indices = @transform_4, window_bounds = array<i64: 16, 1>}, {pipeline_mode = #tpu.pipeline_mode<synchronous>, transform_indices = @transform_5, window_bounds = array<i64: 4, 144>}, {pipeline_mode = #tpu.pipeline_mode<synchronous>, transform_indices = @transform_6, window_bounds = array<i64: 9, 256>}, {transform_indices = @transform_7, window_bounds = array<i64: 4, 256>}]} {
    %c0 = arith.constant 0 : index
    %c0_0 = arith.constant 0 : index
    %0 = vector.load %arg1[%c0, %c0_0] : memref<4x256xf32, #tpu.memory_space<vmem>>, vector<4x256xf32>
    %c0_1 = arith.constant 0 : index
    %c0_2 = arith.constant 0 : index
    %1 = vector.load %arg2[%c0_1, %c0_2] : memref<4x1xf32, #tpu.memory_space<vmem>>, vector<4x1xf32>
    %2 = vector.broadcast %1 : vector<4x1xf32> to vector<4x256xf32>
    %3 = arith.mulf %0, %2 : vector<4x256xf32>
    %c0_3 = arith.constant 0 : index
    %c0_4 = arith.constant 0 : index
    %4 = vector.load %arg3[%c0_3, %c0_4] : memref<4x1xf32, #tpu.memory_space<vmem>>, vector<4x1xf32>
    %5 = vector.broadcast %4 : vector<4x1xf32> to vector<4x256xf32>
    %6 = arith.addf %3, %5 : vector<4x256xf32>
    %cst = arith.constant 0.000000e+00 : f32
    %7 = vector.broadcast %cst : f32 to vector<4x256xf32>
    %8 = arith.maximumf %6, %7 : vector<4x256xf32>
    %c0_5 = arith.constant 0 : index
    %c0_6 = arith.constant 0 : index
    %9 = vector.load %arg4[%c0_5, %c0_6] : memref<16x4xbf16, #tpu.memory_space<vmem>>, vector<16x4xbf16>
    %10 = arith.truncf %8 : vector<4x256xf32> to vector<4x256xbf16>
    %cst_7 = arith.constant dense<0.000000e+00> : vector<16x256xf32>
    %11 = tpu.matmul %9, %10, %cst_7 {dimension_numbers = #tpu.dot_dimension_numbers<[1], [0], [0], [1], [0, 0, 1, 1], [], []>} : vector<16x4xbf16>, vector<4x256xbf16>, vector<16x256xf32> -> vector<16x256xf32>
    %c0_8 = arith.constant 0 : index
    %c0_9 = arith.constant 0 : index
    %12 = vector.load %arg5[%c0_8, %c0_9] : memref<16x1xf32, #tpu.memory_space<vmem>>, vector<16x1xf32>
    %13 = vector.broadcast %12 : vector<16x1xf32> to vector<16x256xf32>
    %14 = arith.addf %11, %13 : vector<16x256xf32>
    %cst_10 = arith.constant 0.000000e+00 : f32
    %15 = vector.broadcast %cst_10 : f32 to vector<16x256xf32>
    %16 = arith.maximumf %14, %15 : vector<16x256xf32>
    %c17_i32 = arith.constant 17 : i32
    %17 = tpu.dynamic_rotate %16 by %c17_i32 dim 1 : vector<16x256xf32>, i32 -> vector<16x256xf32>
    %c0_11 = arith.constant 0 : index
    %c0_12 = arith.constant 0 : index
    %18 = vector.load %arg7[%c0_11, %c0_12] : memref<9x256xf32, #tpu.memory_space<vmem>>, vector<1x256xf32>
    %19 = vector.broadcast %18 : vector<1x256xf32> to vector<16x256xf32>
    %20 = arith.mulf %17, %19 : vector<16x256xf32>
    %21 = arith.truncf %20 : vector<16x256xf32> to vector<16x256xbf16>
    %c0_13 = arith.constant 0 : index
    %c0_14 = arith.constant 0 : index
    %22 = vector.load %arg9[%c0_13, %c0_14] : memref<144x256xbf16, #tpu.memory_space<vmem>>, vector<16x256xbf16>
    tpu.vector_store %arg9[%c0_13, %c0_14], %21 {strides = array<i32>} : memref<144x256xbf16, #tpu.memory_space<vmem>>, vector<16x256xbf16>,
    %c16_i32 = arith.constant 16 : i32
    %23 = tpu.dynamic_rotate %16 by %c16_i32 dim 1 : vector<16x256xf32>, i32 -> vector<16x256xf32>
    %c1 = arith.constant 1 : index
    %c0_15 = arith.constant 0 : index
    %24 = vector.load %arg7[%c1, %c0_15] : memref<9x256xf32, #tpu.memory_space<vmem>>, vector<1x256xf32>
    %25 = vector.broadcast %24 : vector<1x256xf32> to vector<16x256xf32>
    %26 = arith.mulf %23, %25 : vector<16x256xf32>
    %27 = arith.truncf %26 : vector<16x256xf32> to vector<16x256xbf16>
    %c16 = arith.constant 16 : index
    %c0_16 = arith.constant 0 : index
    %28 = vector.load %arg9[%c16, %c0_16] : memref<144x256xbf16, #tpu.memory_space<vmem>>, vector<16x256xbf16>
    tpu.vector_store %arg9[%c16, %c0_16], %27 {strides = array<i32>} : memref<144x256xbf16, #tpu.memory_space<vmem>>, vector<16x256xbf16>,
    %c15_i32 = arith.constant 15 : i32
    %29 = tpu.dynamic_rotate %16 by %c15_i32 dim 1 : vector<16x256xf32>, i32 -> vector<16x256xf32>
    %c2 = arith.constant 2 : index
    %c0_17 = arith.constant 0 : index
    %30 = vector.load %arg7[%c2, %c0_17] : memref<9x256xf32, #tpu.memory_space<vmem>>, vector<1x256xf32>
    %31 = vector.broadcast %30 : vector<1x256xf32> to vector<16x256xf32>
    %32 = arith.mulf %29, %31 : vector<16x256xf32>
    %33 = arith.truncf %32 : vector<16x256xf32> to vector<16x256xbf16>
    %c32 = arith.constant 32 : index
    %c0_18 = arith.constant 0 : index
    %34 = vector.load %arg9[%c32, %c0_18] : memref<144x256xbf16, #tpu.memory_space<vmem>>, vector<16x256xbf16>
    tpu.vector_store %arg9[%c32, %c0_18], %33 {strides = array<i32>} : memref<144x256xbf16, #tpu.memory_space<vmem>>, vector<16x256xbf16>,
    %c1_i32 = arith.constant 1 : i32
    %35 = tpu.dynamic_rotate %16 by %c1_i32 dim 1 : vector<16x256xf32>, i32 -> vector<16x256xf32>
    %c3 = arith.constant 3 : index
    %c0_19 = arith.constant 0 : index
    %36 = vector.load %arg7[%c3, %c0_19] : memref<9x256xf32, #tpu.memory_space<vmem>>, vector<1x256xf32>
    %37 = vector.broadcast %36 : vector<1x256xf32> to vector<16x256xf32>
    %38 = arith.mulf %35, %37 : vector<16x256xf32>
    %39 = arith.truncf %38 : vector<16x256xf32> to vector<16x256xbf16>
    %c48 = arith.constant 48 : index
    %c0_20 = arith.constant 0 : index
    %40 = vector.load %arg9[%c48, %c0_20] : memref<144x256xbf16, #tpu.memory_space<vmem>>, vector<16x256xbf16>
    tpu.vector_store %arg9[%c48, %c0_20], %39 {strides = array<i32>} : memref<144x256xbf16, #tpu.memory_space<vmem>>, vector<16x256xbf16>,
    %41 = arith.truncf %16 : vector<16x256xf32> to vector<16x256xbf16>
    %c64 = arith.constant 64 : index
    %c0_21 = arith.constant 0 : index
    %42 = vector.load %arg9[%c64, %c0_21] : memref<144x256xbf16, #tpu.memory_space<vmem>>, vector<16x256xbf16>
    tpu.vector_store %arg9[%c64, %c0_21], %41 {strides = array<i32>} : memref<144x256xbf16, #tpu.memory_space<vmem>>, vector<16x256xbf16>,
    %c255_i32 = arith.constant 255 : i32
    %43 = tpu.dynamic_rotate %16 by %c255_i32 dim 1 : vector<16x256xf32>, i32 -> vector<16x256xf32>
    %c5 = arith.constant 5 : index
    %c0_22 = arith.constant 0 : index
    %44 = vector.load %arg7[%c5, %c0_22] : memref<9x256xf32, #tpu.memory_space<vmem>>, vector<1x256xf32>
    %45 = vector.broadcast %44 : vector<1x256xf32> to vector<16x256xf32>
    %46 = arith.mulf %43, %45 : vector<16x256xf32>
    %47 = arith.truncf %46 : vector<16x256xf32> to vector<16x256xbf16>
    %c80 = arith.constant 80 : index
    %c0_23 = arith.constant 0 : index
    %48 = vector.load %arg9[%c80, %c0_23] : memref<144x256xbf16, #tpu.memory_space<vmem>>, vector<16x256xbf16>
    tpu.vector_store %arg9[%c80, %c0_23], %47 {strides = array<i32>} : memref<144x256xbf16, #tpu.memory_space<vmem>>, vector<16x256xbf16>,
    %c241_i32 = arith.constant 241 : i32
    %49 = tpu.dynamic_rotate %16 by %c241_i32 dim 1 : vector<16x256xf32>, i32 -> vector<16x256xf32>
    %c6 = arith.constant 6 : index
    %c0_24 = arith.constant 0 : index
    %50 = vector.load %arg7[%c6, %c0_24] : memref<9x256xf32, #tpu.memory_space<vmem>>, vector<1x256xf32>
    %51 = vector.broadcast %50 : vector<1x256xf32> to vector<16x256xf32>
    %52 = arith.mulf %49, %51 : vector<16x256xf32>
    %53 = arith.truncf %52 : vector<16x256xf32> to vector<16x256xbf16>
    %c96 = arith.constant 96 : index
    %c0_25 = arith.constant 0 : index
    %54 = vector.load %arg9[%c96, %c0_25] : memref<144x256xbf16, #tpu.memory_space<vmem>>, vector<16x256xbf16>
    tpu.vector_store %arg9[%c96, %c0_25], %53 {strides = array<i32>} : memref<144x256xbf16, #tpu.memory_space<vmem>>, vector<16x256xbf16>,
    %c240_i32 = arith.constant 240 : i32
    %55 = tpu.dynamic_rotate %16 by %c240_i32 dim 1 : vector<16x256xf32>, i32 -> vector<16x256xf32>
    %c7 = arith.constant 7 : index
    %c0_26 = arith.constant 0 : index
    %56 = vector.load %arg7[%c7, %c0_26] : memref<9x256xf32, #tpu.memory_space<vmem>>, vector<1x256xf32>
    %57 = vector.broadcast %56 : vector<1x256xf32> to vector<16x256xf32>
    %58 = arith.mulf %55, %57 : vector<16x256xf32>
    %59 = arith.truncf %58 : vector<16x256xf32> to vector<16x256xbf16>
    %c112 = arith.constant 112 : index
    %c0_27 = arith.constant 0 : index
    %60 = vector.load %arg9[%c112, %c0_27] : memref<144x256xbf16, #tpu.memory_space<vmem>>, vector<16x256xbf16>
    tpu.vector_store %arg9[%c112, %c0_27], %59 {strides = array<i32>} : memref<144x256xbf16, #tpu.memory_space<vmem>>, vector<16x256xbf16>,
    %c239_i32 = arith.constant 239 : i32
    %61 = tpu.dynamic_rotate %16 by %c239_i32 dim 1 : vector<16x256xf32>, i32 -> vector<16x256xf32>
    %c8 = arith.constant 8 : index
    %c0_28 = arith.constant 0 : index
    %62 = vector.load %arg7[%c8, %c0_28] : memref<9x256xf32, #tpu.memory_space<vmem>>, vector<1x256xf32>
    %63 = vector.broadcast %62 : vector<1x256xf32> to vector<16x256xf32>
    %64 = arith.mulf %61, %63 : vector<16x256xf32>
    %65 = arith.truncf %64 : vector<16x256xf32> to vector<16x256xbf16>
    %c128 = arith.constant 128 : index
    %c0_29 = arith.constant 0 : index
    %66 = vector.load %arg9[%c128, %c0_29] : memref<144x256xbf16, #tpu.memory_space<vmem>>, vector<16x256xbf16>
    tpu.vector_store %arg9[%c128, %c0_29], %65 {strides = array<i32>} : memref<144x256xbf16, #tpu.memory_space<vmem>>, vector<16x256xbf16>,
    %c0_30 = arith.constant 0 : index
    %c0_31 = arith.constant 0 : index
    %67 = vector.load %arg6[%c0_30, %c0_31] : memref<4x144xbf16, #tpu.memory_space<vmem>>, vector<4x144xbf16>
    %c0_32 = arith.constant 0 : index
    %c0_33 = arith.constant 0 : index
    %68 = vector.load %arg9[%c0_32, %c0_33] : memref<144x256xbf16, #tpu.memory_space<vmem>>, vector<144x256xbf16>
    %cst_34 = arith.constant dense<0.000000e+00> : vector<4x256xf32>
    %69 = tpu.matmul %67, %68, %cst_34 {dimension_numbers = #tpu.dot_dimension_numbers<[1], [0], [0], [1], [0, 0, 1, 1], [], []>} : vector<4x144xbf16>, vector<144x256xbf16>, vector<4x256xf32> -> vector<4x256xf32>
    %c0_35 = arith.constant 0 : index
    %c0_36 = arith.constant 0 : index
    %70 = vector.load %arg8[%c0_35, %c0_36] : memref<4x256xf32, #tpu.memory_space<vmem>>, vector<4x256xf32>
    tpu.vector_store %arg8[%c0_35, %c0_36], %69 {strides = array<i32>} : memref<4x256xf32, #tpu.memory_space<vmem>>, vector<4x256xf32>,
    return
  }
  func.func @transform_0(%arg0: i32) -> (i32, i32) {
    %c0_i32 = arith.constant 0 : i32
    %c0_i32_0 = arith.constant 0 : i32
    return %c0_i32, %arg0 : i32, i32
  }
  func.func @transform_1(%arg0: i32) -> (i32, i32) {
    %c0_i32 = arith.constant 0 : i32
    %c0_i32_0 = arith.constant 0 : i32
    %c0_i32_1 = arith.constant 0 : i32
    return %c0_i32, %c0_i32_0 : i32, i32
  }
  func.func @transform_2(%arg0: i32) -> (i32, i32) {
    %c0_i32 = arith.constant 0 : i32
    %c0_i32_0 = arith.constant 0 : i32
    %c0_i32_1 = arith.constant 0 : i32
    return %c0_i32, %c0_i32_0 : i32, i32
  }
  func.func @transform_3(%arg0: i32) -> (i32, i32) {
    %c0_i32 = arith.constant 0 : i32
    %c0_i32_0 = arith.constant 0 : i32
    %c0_i32_1 = arith.constant 0 : i32
    return %c0_i32, %c0_i32_0 : i32, i32
  }
  func.func @transform_4(%arg0: i32) -> (i32, i32) {
    %c0_i32 = arith.constant 0 : i32
    %c0_i32_0 = arith.constant 0 : i32
    %c0_i32_1 = arith.constant 0 : i32
    return %c0_i32, %c0_i32_0 : i32, i32
  }
  func.func @transform_5(%arg0: i32) -> (i32, i32) {
    %c0_i32 = arith.constant 0 : i32
    %c0_i32_0 = arith.constant 0 : i32
    %c0_i32_1 = arith.constant 0 : i32
    return %c0_i32, %c0_i32_0 : i32, i32
  }
  func.func @transform_6(%arg0: i32) -> (i32, i32) {
    %c0_i32 = arith.constant 0 : i32
    %c0_i32_0 = arith.constant 0 : i32
    %c0_i32_1 = arith.constant 0 : i32
    return %c0_i32, %c0_i32_0 : i32, i32
  }
  func.func @transform_7(%arg0: i32) -> (i32, i32) {
    %c0_i32 = arith.constant 0 : i32
    %c0_i32_0 = arith.constant 0 : i32
    return %c0_i32, %arg0 : i32, i32
  }
}

</mosaic_0001>

<llo_original>
// kernel: tpu_custom_call.1
$region0: #{tpu_custom_call.1}
  #allocation0 [shape = 'u32[]', space=smem, size = 0x4, offset = 0x4, fixed_abs, tag = 'smem constant byte address 0x4 - core index']
  #allocation1 [shape = 'u32[144,128]{1,0:T(1,128)}', space=vmem, size = 0x12000, scoped, tag = 'internal scratch']
  #allocation2 [shape = 'bf16[144,256]{1,0:T(16,128)(2,1)}', space=vmem, size = 0x12000, scoped, tag = 'scratch operand']
  %s0 = inlined_call_operand.vmem [shape: f32[4,512], index: 0, kind: input, shape index: {}]
  %s1 = inlined_call_operand.vmem [shape: f32[4,1], index: 1, kind: input, shape index: {}]
  %s2 = inlined_call_operand.vmem [shape: f32[4,1], index: 2, kind: input, shape index: {}]
  %s3 = inlined_call_operand.vmem [shape: bf16[16,4], index: 3, kind: input, shape index: {}]
  %s4 = inlined_call_operand.vmem [shape: f32[16,1], index: 4, kind: input, shape index: {}]
  %s5 = inlined_call_operand.vmem [shape: bf16[4,144], index: 5, kind: input, shape index: {}]
  %s6 = inlined_call_operand.vmem [shape: f32[9,256], index: 6, kind: input, shape index: {}]
  %s7 = inlined_call_operand.hbm [shape: f32[4,512], index: 7, kind: output, shape index: {}]
  %s8 = sld [smem:[#allocation0]]
  $region61: #{tpu_custom_call.1} parent=0
    _
  %s10 = ssub.s32 1, %s8
  %s11 = scalar_select 0, %s10, %s8
  $region1: #{tpu_custom_call.1} parent=0
    #allocation3 [shape = 'u8[8192]{0}', space=vmem, size = 0x2000, scoped, tag = 'output window, operand 0']
    #allocation4 [shape = 's32[2]{0}', space=sflag, size = 0x8, scoped, tag = 'scoped memory for tpu_custom_call.1']
    %12 = vsyncpa [#allocation4], 0
    %s13 = scalar_lea.sflag [#allocation4], 1
    %14 = vsyncpa %s13, 0
    loop: start=0, step=1, limit=4
    $region2: #{tpu_custom_call.1} parent=1 // loop_pre_header
      _
    $region3: #{tpu_custom_call.1} parent=1 // loop_header
      %s16 = sphi 0, %s20
      %p17 = scmp.ge.s32.totalorder %s16, 4
      %s26 = sphi 0, %s28
      %s29 = sphi 0, %s26
      %s30 = sphi 0, %s29
      %s46 = sphi 0, %s30
      %s50 = sphi 0, %s50
      %s52 = sphi 0, %s50
      %s53 = sphi 0, %s52
      %s67 = sphi 0, %s53
      %s71 = sphi 0, %s71
      %s73 = sphi 0, %s71
      %s74 = sphi 0, %s73
      %s88 = sphi 0, %s74
      %s92 = sphi 0, %s92
      %s94 = sphi 0, %s92
      %s95 = sphi 0, %s94
      %s109 = sphi 0, %s95
      %s113 = sphi 0, %s113
      %s115 = sphi 0, %s113
      %s116 = sphi 0, %s115
      %s130 = sphi 0, %s116
      %s134 = sphi 0, %s134
      %s136 = sphi 0, %s134
      %s137 = sphi 0, %s136
      %s151 = sphi 0, %s137
      %s155 = sphi 0, %s155
      %s157 = sphi 0, %s155
      %s158 = sphi 0, %s157
      %s172 = sphi 0, %s158
      %s178 = sphi 0, %s180
      %s181 = sphi 0, %s178
      %s182 = sphi 0, %s181
      %s198 = sphi 0, %s182
    $region4: #{tpu_custom_call.1} parent=1 // loop_header_branch
      %19 = sbr.rel (%p17) target = $region8
    $region5: #{tpu_custom_call.1} parent=1 // loop_body
      %s21 = ssub.s32 %s16, 1
      %s22 = ssub.s32 %s16, 2
      %s23 = sadd.s32 %s16, 1
      %s24 = ssub.s32 %s16, %s23
      %p25 = scmp.eq.s32.totalorder %s24, 0
      %s27 = sadd.s32 %s26, 1
      %s28 = scalar_select %p25, %s26, %s27
      %p31 = pneg %p25
      %p32 = scmp.eq.s32.totalorder %s16, 1
      %p33 = por %p31, %p32
      %p34 = scmp.ne.s32.totalorder %s26, %s29
      %p35 = scmp.eq.s32.totalorder %s16, 0
      %p36 = por %p34, %p35
      %p37 = scmp.ne.s32.totalorder %s26, %s29
      %p38 = scmp.eq.s32.totalorder %s21, 1
      %p39 = por %p37, %p38
      %p40 = scmp.ne.s32.totalorder %s29, %s30
      %p41 = scmp.eq.s32.totalorder %s21, 0
      %p42 = por %p40, %p41
      %p43 = scmp.ne.s32.totalorder %s29, %s30
      %p44 = scmp.eq.s32.totalorder %s22, 1
      %p45 = por %p43, %p44
      %p47 = scmp.ne.s32.totalorder %s30, %s46
      %p48 = scmp.eq.s32.totalorder %s22, 0
      %p49 = por %p47, %p48
      %s51 = sadd.s32 %s50, 1
      %p54 = scmp.eq.s32.totalorder %s16, 1
      %p55 = scmp.ne.s32.totalorder %s50, %s52
      %p56 = scmp.eq.s32.totalorder %s16, 0
      %p57 = por %p55, %p56
      %p58 = scmp.ne.s32.totalorder %s50, %s52
      %p59 = scmp.eq.s32.totalorder %s21, 1
      %p60 = por %p58, %p59
      %p61 = scmp.ne.s32.totalorder %s52, %s53
      %p62 = scmp.eq.s32.totalorder %s21, 0
      %p63 = por %p61, %p62
      %p64 = scmp.ne.s32.totalorder %s52, %s53
      %p65 = scmp.eq.s32.totalorder %s22, 1
      %p66 = por %p64, %p65
      %p68 = scmp.ne.s32.totalorder %s53, %s67
      %p69 = scmp.eq.s32.totalorder %s22, 0
      %p70 = por %p68, %p69
      %s72 = sadd.s32 %s71, 1
      %p75 = scmp.eq.s32.totalorder %s16, 1
      %p76 = scmp.ne.s32.totalorder %s71, %s73
      %p77 = scmp.eq.s32.totalorder %s16, 0
      %p78 = por %p76, %p77
      %p79 = scmp.ne.s32.totalorder %s71, %s73
      %p80 = scmp.eq.s32.totalorder %s21, 1
      %p81 = por %p79, %p80
      %p82 = scmp.ne.s32.totalorder %s73, %s74
      %p83 = scmp.eq.s32.totalorder %s21, 0
      %p84 = por %p82, %p83
      %p85 = scmp.ne.s32.totalorder %s73, %s74
      %p86 = scmp.eq.s32.totalorder %s22, 1
      %p87 = por %p85, %p86
      %p89 = scmp.ne.s32.totalorder %s74, %s88
      %p90 = scmp.eq.s32.totalorder %s22, 0
      %p91 = por %p89, %p90
      %s93 = sadd.s32 %s92, 1
      %p96 = scmp.eq.s32.totalorder %s16, 1
      %p97 = scmp.ne.s32.totalorder %s92, %s94
      %p98 = scmp.eq.s32.totalorder %s16, 0
      %p99 = por %p97, %p98
      %p100 = scmp.ne.s32.totalorder %s92, %s94
      %p101 = scmp.eq.s32.totalorder %s21, 1
      %p102 = por %p100, %p101
      %p103 = scmp.ne.s32.totalorder %s94, %s95
      %p104 = scmp.eq.s32.totalorder %s21, 0
      %p105 = por %p103, %p104
      %p106 = scmp.ne.s32.totalorder %s94, %s95
      %p107 = scmp.eq.s32.totalorder %s22, 1
      %p108 = por %p106, %p107
      %p110 = scmp.ne.s32.totalorder %s95, %s109
      %p111 = scmp.eq.s32.totalorder %s22, 0
      %p112 = por %p110, %p111
      %s114 = sadd.s32 %s113, 1
      %p117 = scmp.eq.s32.totalorder %s16, 1
      %p118 = scmp.ne.s32.totalorder %s113, %s115
      %p119 = scmp.eq.s32.totalorder %s16, 0
      %p120 = por %p118, %p119
      %p121 = scmp.ne.s32.totalorder %s113, %s115
      %p122 = scmp.eq.s32.totalorder %s21, 1
      %p123 = por %p121, %p122
      %p124 = scmp.ne.s32.totalorder %s115, %s116
      %p125 = scmp.eq.s32.totalorder %s21, 0
      %p126 = por %p124, %p125
      %p127 = scmp.ne.s32.totalorder %s115, %s116
      %p128 = scmp.eq.s32.totalorder %s22, 1
      %p129 = por %p127, %p128
      %p131 = scmp.ne.s32.totalorder %s116, %s130
      %p132 = scmp.eq.s32.totalorder %s22, 0
      %p133 = por %p131, %p132
      %s135 = sadd.s32 %s134, 1
      %p138 = scmp.eq.s32.totalorder %s16, 1
      %p139 = scmp.ne.s32.totalorder %s134, %s136
      %p140 = scmp.eq.s32.totalorder %s16, 0
      %p141 = por %p139, %p140
      %p142 = scmp.ne.s32.totalorder %s134, %s136
      %p143 = scmp.eq.s32.totalorder %s21, 1
      %p144 = por %p142, %p143
      %p145 = scmp.ne.s32.totalorder %s136, %s137
      %p146 = scmp.eq.s32.totalorder %s21, 0
      %p147 = por %p145, %p146
      %p148 = scmp.ne.s32.totalorder %s136, %s137
      %p149 = scmp.eq.s32.totalorder %s22, 1
      %p150 = por %p148, %p149
      %p152 = scmp.ne.s32.totalorder %s137, %s151
      %p153 = scmp.eq.s32.totalorder %s22, 0
      %p154 = por %p152, %p153
      %s156 = sadd.s32 %s155, 1
      %p159 = scmp.eq.s32.totalorder %s16, 1
      %p160 = scmp.ne.s32.totalorder %s155, %s157
      %p161 = scmp.eq.s32.totalorder %s16, 0
      %p162 = por %p160, %p161
      %p163 = scmp.ne.s32.totalorder %s155, %s157
      %p164 = scmp.eq.s32.totalorder %s21, 1
      %p165 = por %p163, %p164
      %p166 = scmp.ne.s32.totalorder %s157, %s158
      %p167 = scmp.eq.s32.totalorder %s21, 0
      %p168 = por %p166, %p167
      %p169 = scmp.ne.s32.totalorder %s157, %s158
      %p170 = scmp.eq.s32.totalorder %s22, 1
      %p171 = por %p169, %p170
      %p173 = scmp.ne.s32.totalorder %s158, %s172
      %p174 = scmp.eq.s32.totalorder %s22, 0
      %p175 = por %p173, %p174
      %s176 = ssub.s32 %s16, %s23
      %p177 = scmp.eq.s32.totalorder %s176, 0
      %s179 = sadd.s32 %s178, 1
      %s180 = scalar_select %p177, %s178, %s179
      %p183 = pneg %p177
      %p184 = scmp.eq.s32.totalorder %s16, 1
      %p185 = por %p183, %p184
      %p186 = scmp.ne.s32.totalorder %s178, %s181
      %p187 = scmp.eq.s32.totalorder %s16, 0
      %p188 = por %p186, %p187
      %p189 = scmp.ne.s32.totalorder %s178, %s181
      %p190 = scmp.eq.s32.totalorder %s21, 1
      %p191 = por %p189, %p190
      %p192 = scmp.ne.s32.totalorder %s181, %s182
      %p193 = scmp.eq.s32.totalorder %s21, 0
      %p194 = por %p192, %p193
      %p195 = scmp.ne.s32.totalorder %s181, %s182
      %p196 = scmp.eq.s32.totalorder %s22, 1
      %p197 = por %p195, %p196
      %p199 = scmp.ne.s32.totalorder %s182, %s198
      %p200 = scmp.eq.s32.totalorder %s22, 0
      %p201 = por %p199, %p200
      %p202 = scmp.le.s32.totalorder 1, %s16
      %p203 = scmp.lt.s32.totalorder %s16, 3
      %p204 = pnand %p202, %p203
      %p205 = pneg %p204
      // Predicated region
      $region9: #{tpu_custom_call.1} parent=5 // pred_check
        _
      $region10: #{tpu_custom_call.1} parent=5 // pred_check_branch
        %207 = sbr.rel (%p204) target = $region12
      $region11: #{tpu_custom_call.1} parent=5 // pred_region
        %s208 = ssub.s32 %s16, 1
        // Predicated region
        $region13: #{tpu_custom_call.1} parent=11 // pred_check
          %p209 = pneg %p63
        $region14: #{tpu_custom_call.1} parent=11 // pred_check_branch
          %211 = sbr.rel (%p209) target = $region16
        $region15: #{tpu_custom_call.1} parent=11 // pred_region
          _
        $region16: #{tpu_custom_call.1} parent=11 // pred_fallthru
          _
        // Predicated region
        $region17: #{tpu_custom_call.1} parent=11 // pred_check
          %p212 = pneg %p84
        $region18: #{tpu_custom_call.1} parent=11 // pred_check_branch
          %214 = sbr.rel (%p212) target = $region20
        $region19: #{tpu_custom_call.1} parent=11 // pred_region
          _
        $region20: #{tpu_custom_call.1} parent=11 // pred_fallthru
          _
        // Predicated region
        $region21: #{tpu_custom_call.1} parent=11 // pred_check
          %p215 = pneg %p105
        $region22: #{tpu_custom_call.1} parent=11 // pred_check_branch
          %217 = sbr.rel (%p215) target = $region24
        $region23: #{tpu_custom_call.1} parent=11 // pred_region
          _
        $region24: #{tpu_custom_call.1} parent=11 // pred_fallthru
          _
        // Predicated region
        $region25: #{tpu_custom_call.1} parent=11 // pred_check
          %p218 = pneg %p126
        $region26: #{tpu_custom_call.1} parent=11 // pred_check_branch
          %220 = sbr.rel (%p218) target = $region28
        $region27: #{tpu_custom_call.1} parent=11 // pred_region
          _
        $region28: #{tpu_custom_call.1} parent=11 // pred_fallthru
          _
        // Predicated region
        $region29: #{tpu_custom_call.1} parent=11 // pred_check
          %p221 = pneg %p147
        $region30: #{tpu_custom_call.1} parent=11 // pred_check_branch
          %223 = sbr.rel (%p221) target = $region32
        $region31: #{tpu_custom_call.1} parent=11 // pred_region
          _
        $region32: #{tpu_custom_call.1} parent=11 // pred_fallthru
          _
        // Predicated region
        $region33: #{tpu_custom_call.1} parent=11 // pred_check
          %p224 = pneg %p168
        $region34: #{tpu_custom_call.1} parent=11 // pred_check_branch
          %226 = sbr.rel (%p224) target = $region36
        $region35: #{tpu_custom_call.1} parent=11 // pred_region
          _
        $region36: #{tpu_custom_call.1} parent=11 // pred_fallthru
          _
      $region12: #{tpu_custom_call.1} parent=5 // pred_fallthru
        _
      %p227 = scmp.lt.s32.totalorder %s16, 2
      // Predicated region
      $region37: #{tpu_custom_call.1} parent=5 // pred_check
        %p228 = pneg %p227
      $region38: #{tpu_custom_call.1} parent=5 // pred_check_branch
        %230 = sbr.rel (%p228) target = $region40
      $region39: #{tpu_custom_call.1} parent=5 // pred_region
        // Predicated region
        $region41: #{tpu_custom_call.1} parent=39 // pred_check
          %p231 = pneg %p36
        $region42: #{tpu_custom_call.1} parent=39 // pred_check_branch
          %233 = sbr.rel (%p231) target = $region44
        $region43: #{tpu_custom_call.1} parent=39 // pred_region
          %s234 = smul.u32 2, %s16
          %p235 = scmp.lt.s32.totalorder %s234, 3
          %s236 = scalar_select %p235, %s234, 3
          %s237 = smul.addr %s236, 4
          %s238 = scalar_lea.vmem %s0, %s237
          %s239 = smul.u32 2, %s16
        $region44: #{tpu_custom_call.1} parent=39 // pred_fallthru
          _
      $region40: #{tpu_custom_call.1} parent=5 // pred_fallthru
        _
      %p240 = scmp.le.s32.totalorder 1, %s16
      %p241 = scmp.lt.s32.totalorder %s16, 3
      %p242 = pnand %p240, %p241
      %p243 = pneg %p242
      // Predicated region
      $region45: #{tpu_custom_call.1} parent=5 // pred_check
        _
      $region46: #{tpu_custom_call.1} parent=5 // pred_check_branch
        %245 = sbr.rel (%p242) target = $region48
      $region47: #{tpu_custom_call.1} parent=5 // pred_region
        %s246 = ssub.s32 %s16, 1
        %s247 = smul.u32 2, %s21
        %p248 = scmp.lt.s32.totalorder %s247, 3
        %s249 = scalar_select %p248, %s247, 3
        %s250 = smul.addr %s249, 4
        %s251 = scalar_lea.vmem %s0, %s250
        %p252 = pneg %p42
        %p253 = pneg %p39
        %p254 = pneg %p63
        %p255 = pneg %p60
        %p256 = pneg %p84
        %p257 = pneg %p81
        %p258 = pneg %p105
        %p259 = pneg %p102
        %p260 = pneg %p126
        %p261 = pneg %p123
        %p262 = pneg %p147
        %p263 = pneg %p144
        %p264 = pneg %p168
        %p265 = pneg %p165
        %p266 = pneg %p194
        %p267 = pneg %p191
        %s268 = sand.u32 %s181, 1
        %s269 = scalar_lea.sflag [#allocation4], %s268
        %s270 = sand.u32 %s181, 1
        %s271 = smul.addr %s270, 8
        %s272 = scalar_lea.vmem [#allocation3], %s271
        %s273 = smul.u32 2, %s21
        %p274 = scmp.lt.s32.totalorder %s273, 3
        %s275 = scalar_select %p274, %s273, 3
        %s276 = smul.addr %s275, 4
        %s277 = scalar_lea.vmem %s0, %s276
        %s278 = smul.u32 2, %s21
        %s279 = smul.u32 2, %s21
        %v281 = vld [vmem:[%s277] sm:$0xff]
        %v282 = vld [vmem:[%s1] sm:$0xf]
        %284 = vset.pattern.permute.xlu0 0
        %285 = vperm.xlu0 %284, %v282
        %v286 = vpop.permute.xlu0 %285
        %v288 = vunpack.c.l.s4 839922192
        %v289 = vunpack.c.0.s8 %v288
        %v290 = vlaneseq
        %v291 = vshrl.u32 %v290, 7
        %v292 = vsub.s32 %v289, %v291
        %v293 = vrot.slane %v286, %v292
        %v295 = vmul.f32 %v281, %v293
        %v296 = vld [vmem:[%s2] sm:$0xf]
        %298 = vset.pattern.permute.xlu0 0
        %299 = vperm.xlu0 %298, %v296
        %v300 = vpop.permute.xlu0 %299
        %v302 = vunpack.c.l.s4 839922192
        %v303 = vunpack.c.0.s8 %v302
        %v304 = vlaneseq
        %v305 = vshrl.u32 %v304, 7
        %v306 = vsub.s32 %v303, %v305
        %v307 = vrot.slane %v300, %v306
        %v309 = vadd.f32 %v295, %v307
        %v310 = vmax.f32 %v309, 0.0
        %v311 = vld [vmem:[%s3] sm:$0xf]
        %v312 = vld [vmem:[%s3 + $0x4] sm:$0xf]
        %v314 = vcombine.high %v310, %v310
        %v316 = vpack.c.bf16 %v310, %v310
        %v317 = vpack.c.bf16 %v314, %v314
        %v318 = vld [vmem:[%s4] sm:$0xff]
        %v319 = vld [vmem:[%s4 + $0x8] sm:$0xff]
        %321 = vset.pattern.permute.xlu0 0
        %322 = vperm.xlu0 %321, %v318
        %v323 = vpop.permute.xlu0 %322
        %326 = vset.pattern.permute.xlu0 0
        %327 = vperm.xlu0 %326, %v319
        %v328 = vpop.permute.xlu0 %327
        %v332 = vunpack.c.l.b16 %v311
        %v333 = vunpack.c.l.b16 %v312
        %v334 = vpack.c.b16 %v333, %v332
        %vm335 = vcmask 31744
        %v337 = vsel %vm335, %v334, 0
        %vm339 = vcmask 1041408
        %v341 = vsel %vm339, %v316, 0
        %v344 = vsel %vm339, %v317, 0
        %346 = vmatprep.subr.bf16.mxu0 %v344
        %347 = vmatpush1.bf16.msra.mxu0 %v341
        %348 = vmatprep.subr.bf16.mxu0 0
        %349 = vmatpush1.bf16.msra.mxu0 0
        %350 = vmatprep.subr.bf16.mxu0 0
        %351 = vmatpush1.bf16.msra.mxu0 0
        %352 = vmatprep.subr.bf16.mxu0 0
        %353 = vmatpush1.bf16.msra.mxu0 0
        %354 = vmatprep.subr.bf16.mxu0 0
        %355 = vmatpush1.bf16.msra.mxu0 0
        %356 = vmatprep.subr.bf16.mxu0 0
        %357 = vmatpush1.bf16.msra.mxu0 0
        %358 = vmatprep.subr.bf16.mxu0 0
        %359 = vmatpush1.bf16.msra.mxu0 0
        %360 = vmatprep.subr.bf16.mxu0 0
        %361 = vmatpush1.bf16.msra.mxu0 0
        %362 = vmatprep.subr.bf16.mxu0 0
        %363 = vmatpush1.bf16.msra.mxu0 0
        %364 = vmatprep.subr.bf16.mxu0 0
        %365 = vmatpush1.bf16.msra.mxu0 0
        %366 = vmatprep.subr.bf16.mxu0 0
        %367 = vmatpush1.bf16.msra.mxu0 0
        %368 = vmatprep.subr.bf16.mxu0 0
        %369 = vmatpush1.bf16.msra.mxu0 0
        %370 = vmatprep.subr.bf16.mxu0 0
        %371 = vmatpush1.bf16.msra.mxu0 0
        %372 = vmatprep.subr.bf16.mxu0 0
        %373 = vmatpush1.bf16.msra.mxu0 0
        %374 = vmatprep.subr.bf16.mxu0 0
        %375 = vmatpush1.bf16.msra.mxu0 0
        %376 = vmatprep.subr.bf16.mxu0 0
        %377 = vmatpush1.bf16.msra.mxu0 0
        %378 = vmatprep.mubr.bf16.mxu0 0
        %379 = vmatmul.mubr.bf16.gmra.mrb[0].mxu0 %v337
        %v380 = vpop.f32.mrb[0].mxu0
        %v381 = vadd.f32 %v323, %v380
        %v382 = vpop.f32.mrb[0].mxu0
        %v383 = vadd.f32 %v323, %v382
        %v384 = vpop.f32.mrb[0].mxu0
        %v385 = vadd.f32 %v328, %v384
        %v386 = vpop.f32.mrb[0].mxu0
        %v387 = vadd.f32 %v328, %v386
        %388 = vdwg.mxu0
        %v389 = vmax.f32 %v381, 0.0
        %v390 = vmax.f32 %v383, 0.0
        %v391 = vmax.f32 %v385, 0.0
        %v392 = vmax.f32 %v387, 0.0
        %393 = vrot.lane.b32.xlu0 %v389, 17
        %v394 = vpop.permute.xlu0 %393
        %395 = vrot.lane.b32.xlu0 %v391, 17
        %v396 = vpop.permute.xlu0 %395
        %397 = vrot.lane.b32.xlu0 %v390, 17
        %v398 = vpop.permute.xlu0 %397
        %399 = vrot.lane.b32.xlu0 %v392, 17
        %v400 = vpop.permute.xlu0 %399
        %v401 = vlaneseq
        %v402 = vand.u32 %v401, 127
        %vm403 = vcmp.lt.s32.totalorder %v402, 17
        %v404 = vsel %vm403, %v394, %v398
        %v405 = vsel %vm403, %v396, %v400
        %v406 = vsel %vm403, %v398, %v394
        %v407 = vsel %vm403, %v400, %v396
        %v408 = vld [vmem:[%s6] ss:$8 sm:$0x3]
        %v410 = vlaneseq
        %v411 = vshrl.u32 %v410, 7
        %v412 = vsub.s32 0, %v411
        %v413 = vrot.slane %v408, %v412
        %v414 = vlaneseq
        %v415 = vshrl.u32 %v414, 7
        %v416 = vsub.s32 1, %v415
        %v417 = vrot.slane %v408, %v416
        %v420 = vmul.f32 %v406, %v413
        %v421 = vmul.f32 %v404, %v417
        %v422 = vmul.f32 %v407, %v413
        %v423 = vmul.f32 %v405, %v417
        %v424 = vpack.c.bf16 %v422, %v420
        %v425 = vpack.c.bf16 %v423, %v421
        %426 = vst [vmem:[#allocation2] sm:$0xff] %v424
        %427 = vst [vmem:[#allocation2 + $0x8] sm:$0xff] %v425
        %428 = vrot.lane.b32.xlu0 %v389, 16
        %v429 = vpop.permute.xlu0 %428
        %430 = vrot.lane.b32.xlu0 %v391, 16
        %v431 = vpop.permute.xlu0 %430
        %432 = vrot.lane.b32.xlu0 %v390, 16
        %v433 = vpop.permute.xlu0 %432
        %434 = vrot.lane.b32.xlu0 %v392, 16
        %v435 = vpop.permute.xlu0 %434
        %vm436 = vcmp.lt.s32.totalorder %v402, 16
        %v437 = vsel %vm436, %v429, %v433
        %v438 = vsel %vm436, %v431, %v435
        %v439 = vsel %vm436, %v433, %v429
        %v440 = vsel %vm436, %v435, %v431
        %s441 = scalar_lea.vmem %s6, 1
        %v442 = vld [vmem:[%s441] ss:$8 sm:$0x3]
        %v444 = vlaneseq
        %v445 = vshrl.u32 %v444, 7
        %v446 = vsub.s32 0, %v445
        %v447 = vrot.slane %v442, %v446
        %v448 = vlaneseq
        %v449 = vshrl.u32 %v448, 7
        %v450 = vsub.s32 1, %v449
        %v451 = vrot.slane %v442, %v450
        %v454 = vmul.f32 %v439, %v447
        %v455 = vmul.f32 %v437, %v451
        %v456 = vmul.f32 %v440, %v447
        %v457 = vmul.f32 %v438, %v451
        %v458 = vpack.c.bf16 %v456, %v454
        %v459 = vpack.c.bf16 %v457, %v455
        %460 = vst [vmem:[#allocation2 + $0x10] sm:$0xff] %v458
        %461 = vst [vmem:[#allocation2 + $0x18] sm:$0xff] %v459
        %462 = vrot.lane.b32.xlu0 %v389, 15
        %v463 = vpop.permute.xlu0 %462
        %464 = vrot.lane.b32.xlu0 %v391, 15
        %v465 = vpop.permute.xlu0 %464
        %466 = vrot.lane.b32.xlu0 %v390, 15
        %v467 = vpop.permute.xlu0 %466
        %468 = vrot.lane.b32.xlu0 %v392, 15
        %v469 = vpop.permute.xlu0 %468
        %vm470 = vcmp.lt.s32.totalorder %v402, 15
        %v471 = vsel %vm470, %v463, %v467
        %v472 = vsel %vm470, %v465, %v469
        %v473 = vsel %vm470, %v467, %v463
        %v474 = vsel %vm470, %v469, %v465
        %s475 = scalar_lea.vmem %s6, 2
        %v476 = vld [vmem:[%s475] ss:$8 sm:$0x3]
        %v478 = vlaneseq
        %v479 = vshrl.u32 %v478, 7
        %v480 = vsub.s32 0, %v479
        %v481 = vrot.slane %v476, %v480
        %v482 = vlaneseq
        %v483 = vshrl.u32 %v482, 7
        %v484 = vsub.s32 1, %v483
        %v485 = vrot.slane %v476, %v484
        %v488 = vmul.f32 %v473, %v481
        %v489 = vmul.f32 %v471, %v485
        %v490 = vmul.f32 %v474, %v481
        %v491 = vmul.f32 %v472, %v485
        %v492 = vpack.c.bf16 %v490, %v488
        %v493 = vpack.c.bf16 %v491, %v489
        %494 = vst [vmem:[#allocation2 + $0x20] sm:$0xff] %v492
        %495 = vst [vmem:[#allocation2 + $0x28] sm:$0xff] %v493
        %496 = vrot.lane.b32.xlu0 %v389, 1
        %v497 = vpop.permute.xlu0 %496
        %498 = vrot.lane.b32.xlu0 %v391, 1
        %v499 = vpop.permute.xlu0 %498
        %500 = vrot.lane.b32.xlu0 %v390, 1
        %v501 = vpop.permute.xlu0 %500
        %502 = vrot.lane.b32.xlu0 %v392, 1
        %v503 = vpop.permute.xlu0 %502
        %vm504 = vcmp.lt.s32.totalorder %v402, 1
        %v505 = vsel %vm504, %v497, %v501
        %v506 = vsel %vm504, %v499, %v503
        %v507 = vsel %vm504, %v501, %v497
        %v508 = vsel %vm504, %v503, %v499
        %s509 = scalar_lea.vmem %s6, 3
        %v510 = vld [vmem:[%s509] ss:$8 sm:$0x3]
        %v512 = vlaneseq
        %v513 = vshrl.u32 %v512, 7
        %v514 = vsub.s32 0, %v513
        %v515 = vrot.slane %v510, %v514
        %v516 = vlaneseq
        %v517 = vshrl.u32 %v516, 7
        %v518 = vsub.s32 1, %v517
        %v519 = vrot.slane %v510, %v518
        %v522 = vmul.f32 %v507, %v515
        %v523 = vmul.f32 %v505, %v519
        %v524 = vmul.f32 %v508, %v515
        %v525 = vmul.f32 %v506, %v519
        %v526 = vpack.c.bf16 %v524, %v522
        %v527 = vpack.c.bf16 %v525, %v523
        %528 = vst [vmem:[#allocation2 + $0x30] sm:$0xff] %v526
        %529 = vst [vmem:[#allocation2 + $0x38] sm:$0xff] %v527
        %v530 = vpack.c.bf16 %v391, %v389
        %v531 = vpack.c.bf16 %v392, %v390
        %532 = vst [vmem:[#allocation2 + $0x40] sm:$0xff] %v530
        %533 = vst [vmem:[#allocation2 + $0x48] sm:$0xff] %v531
        %534 = vrot.lane.b32.xlu0 %v389, 127
        %v535 = vpop.permute.xlu0 %534
        %536 = vrot.lane.b32.xlu0 %v391, 127
        %v537 = vpop.permute.xlu0 %536
        %538 = vrot.lane.b32.xlu0 %v390, 127
        %v539 = vpop.permute.xlu0 %538
        %540 = vrot.lane.b32.xlu0 %v392, 127
        %v541 = vpop.permute.xlu0 %540
        %vm542 = vcmp.lt.s32.totalorder %v402, 127
        %v543 = vsel %vm542, %v535, %v539
        %v544 = vsel %vm542, %v537, %v541
        %v545 = vsel %vm542, %v539, %v535
        %v546 = vsel %vm542, %v541, %v537
        %s547 = scalar_lea.vmem %s6, 5
        %v548 = vld [vmem:[%s547] ss:$8 sm:$0x3]
        %v550 = vlaneseq
        %v551 = vshrl.u32 %v550, 7
        %v552 = vsub.s32 0, %v551
        %v553 = vrot.slane %v548, %v552
        %v554 = vlaneseq
        %v555 = vshrl.u32 %v554, 7
        %v556 = vsub.s32 1, %v555
        %v557 = vrot.slane %v548, %v556
        %v560 = vmul.f32 %v543, %v553
        %v561 = vmul.f32 %v545, %v557
        %v562 = vmul.f32 %v544, %v553
        %v563 = vmul.f32 %v546, %v557
        %v564 = vpack.c.bf16 %v562, %v560
        %v565 = vpack.c.bf16 %v563, %v561
        %566 = vst [vmem:[#allocation2 + $0x50] sm:$0xff] %v564
        %567 = vst [vmem:[#allocation2 + $0x58] sm:$0xff] %v565
        %568 = vrot.lane.b32.xlu0 %v389, 113
        %v569 = vpop.permute.xlu0 %568
        %570 = vrot.lane.b32.xlu0 %v391, 113
        %v571 = vpop.permute.xlu0 %570
        %572 = vrot.lane.b32.xlu0 %v390, 113
        %v573 = vpop.permute.xlu0 %572
        %574 = vrot.lane.b32.xlu0 %v392, 113
        %v575 = vpop.permute.xlu0 %574
        %vm576 = vcmp.lt.s32.totalorder %v402, 113
        %v577 = vsel %vm576, %v569, %v573
        %v578 = vsel %vm576, %v571, %v575
        %v579 = vsel %vm576, %v573, %v569
        %v580 = vsel %vm576, %v575, %v571
        %s581 = scalar_lea.vmem %s6, 6
        %v582 = vld [vmem:[%s581] ss:$8 sm:$0x3]
        %v584 = vlaneseq
        %v585 = vshrl.u32 %v584, 7
        %v586 = vsub.s32 0, %v585
        %v587 = vrot.slane %v582, %v586
        %v588 = vlaneseq
        %v589 = vshrl.u32 %v588, 7
        %v590 = vsub.s32 1, %v589
        %v591 = vrot.slane %v582, %v590
        %v594 = vmul.f32 %v577, %v587
        %v595 = vmul.f32 %v579, %v591
        %v596 = vmul.f32 %v578, %v587
        %v597 = vmul.f32 %v580, %v591
        %v598 = vpack.c.bf16 %v596, %v594
        %v599 = vpack.c.bf16 %v597, %v595
        %600 = vst [vmem:[#allocation2 + $0x60] sm:$0xff] %v598
        %601 = vst [vmem:[#allocation2 + $0x68] sm:$0xff] %v599
        %602 = vrot.lane.b32.xlu0 %v389, 112
        %v603 = vpop.permute.xlu0 %602
        %604 = vrot.lane.b32.xlu0 %v391, 112
        %v605 = vpop.permute.xlu0 %604
        %606 = vrot.lane.b32.xlu0 %v390, 112
        %v607 = vpop.permute.xlu0 %606
        %608 = vrot.lane.b32.xlu0 %v392, 112
        %v609 = vpop.permute.xlu0 %608
        %vm610 = vcmp.lt.s32.totalorder %v402, 112
        %v611 = vsel %vm610, %v603, %v607
        %v612 = vsel %vm610, %v605, %v609
        %v613 = vsel %vm610, %v607, %v603
        %v614 = vsel %vm610, %v609, %v605
        %s615 = scalar_lea.vmem %s6, 7
        %v616 = vld [vmem:[%s615] ss:$8 sm:$0x3]
        %v618 = vlaneseq
        %v619 = vshrl.u32 %v618, 7
        %v620 = vsub.s32 0, %v619
        %v621 = vrot.slane %v616, %v620
        %v622 = vlaneseq
        %v623 = vshrl.u32 %v622, 7
        %v624 = vsub.s32 1, %v623
        %v625 = vrot.slane %v616, %v624
        %v628 = vmul.f32 %v611, %v621
        %v629 = vmul.f32 %v613, %v625
        %v630 = vmul.f32 %v612, %v621
        %v631 = vmul.f32 %v614, %v625
        %v632 = vpack.c.bf16 %v630, %v628
        %v633 = vpack.c.bf16 %v631, %v629
        %634 = vst [vmem:[#allocation2 + $0x70] sm:$0xff] %v632
        %635 = vst [vmem:[#allocation2 + $0x78] sm:$0xff] %v633
        %636 = vrot.lane.b32.xlu0 %v389, 111
        %v637 = vpop.permute.xlu0 %636
        %638 = vrot.lane.b32.xlu0 %v391, 111
        %v639 = vpop.permute.xlu0 %638
        %640 = vrot.lane.b32.xlu0 %v390, 111
        %v641 = vpop.permute.xlu0 %640
        %642 = vrot.lane.b32.xlu0 %v392, 111
        %v643 = vpop.permute.xlu0 %642
        %vm644 = vcmp.lt.s32.totalorder %v402, 111
        %v645 = vsel %vm644, %v637, %v641
        %v646 = vsel %vm644, %v639, %v643
        %v647 = vsel %vm644, %v641, %v637
        %v648 = vsel %vm644, %v643, %v639
        %s649 = scalar_lea.vmem %s6, 16
        %v650 = vld [vmem:[%s649] ss:$8 sm:$0x3]
        %v652 = vlaneseq
        %v653 = vshrl.u32 %v652, 7
        %v654 = vsub.s32 0, %v653
        %v655 = vrot.slane %v650, %v654
        %v656 = vlaneseq
        %v657 = vshrl.u32 %v656, 7
        %v658 = vsub.s32 1, %v657
        %v659 = vrot.slane %v650, %v658
        %v662 = vmul.f32 %v645, %v655
        %v663 = vmul.f32 %v647, %v659
        %v664 = vmul.f32 %v646, %v655
        %v665 = vmul.f32 %v648, %v659
        %v666 = vpack.c.bf16 %v664, %v662
        %v667 = vpack.c.bf16 %v665, %v663
        %668 = vst [vmem:[#allocation2 + $0x80] sm:$0xff] %v666
        %669 = vst [vmem:[#allocation2 + $0x88] sm:$0xff] %v667
        %v670 = vld [vmem:[%s5] sm:$0xf]
        %v671 = vld [vmem:[#allocation2] sm:$0xff]
        %v672 = vld [vmem:[#allocation2 + $0x8] sm:$0xff]
        %v673 = vld [vmem:[#allocation2 + $0x10] sm:$0xff]
        %v674 = vld [vmem:[#allocation2 + $0x18] sm:$0xff]
        %v675 = vld [vmem:[#allocation2 + $0x20] sm:$0xff]
        %v676 = vld [vmem:[#allocation2 + $0x28] sm:$0xff]
        %v677 = vld [vmem:[#allocation2 + $0x30] sm:$0xff]
        %v678 = vld [vmem:[#allocation2 + $0x38] sm:$0xff]
        %v679 = vld [vmem:[#allocation2 + $0x40] sm:$0xff]
        %v680 = vld [vmem:[#allocation2 + $0x48] sm:$0xff]
        %v681 = vld [vmem:[#allocation2 + $0x50] sm:$0xff]
        %v682 = vld [vmem:[#allocation2 + $0x58] sm:$0xff]
        %v683 = vld [vmem:[#allocation2 + $0x60] sm:$0xff]
        %v684 = vld [vmem:[#allocation2 + $0x68] sm:$0xff]
        %v685 = vld [vmem:[#allocation2 + $0x70] sm:$0xff]
        %v686 = vld [vmem:[#allocation2 + $0x78] sm:$0xff]
        %v687 = vld [vmem:[#allocation2 + $0x80] sm:$0xff]
        %v688 = vld [vmem:[#allocation2 + $0x88] sm:$0xff]
        %v691 = vunpack.c.l.s4 1983009808
        %v692 = vunpack.c.0.s8 %v691
        %v693 = vlaneseq
        %v694 = vshrl.u32 %v693, 7
        %v695 = vsub.s32 %v692, %v694
        %v696 = vrot.slane %v670, %v695
        %v697 = vcombine.high %v696, %v696
        %vm699 = vcmask 130048
        %v701 = vsel %vm699, %v697, 0
        %703 = vmatprep.subr.bf16.mxu0 %v672
        %704 = vmatpush1.bf16.msra.mxu0 %v671
        %705 = vmatprep.subr.bf16.mxu0 %v674
        %706 = vmatpush1.bf16.msra.mxu0 %v673
        %707 = vmatprep.subr.bf16.mxu0 %v676
        %708 = vmatpush1.bf16.msra.mxu0 %v675
        %709 = vmatprep.subr.bf16.mxu0 %v678
        %710 = vmatpush1.bf16.msra.mxu0 %v677
        %711 = vmatprep.subr.bf16.mxu0 %v680
        %712 = vmatpush1.bf16.msra.mxu0 %v679
        %713 = vmatprep.subr.bf16.mxu0 %v682
        %714 = vmatpush1.bf16.msra.mxu0 %v681
        %715 = vmatprep.subr.bf16.mxu0 %v684
        %716 = vmatpush1.bf16.msra.mxu0 %v683
        %717 = vmatprep.subr.bf16.mxu0 %v686
        %718 = vmatpush1.bf16.msra.mxu0 %v685
        %719 = vmatprep.subr.bf16.mxu0 %v688
        %720 = vmatpush1.bf16.msra.mxu0 %v687
        %721 = vmatprep.subr.bf16.mxu0 0
        %722 = vmatpush1.bf16.msra.mxu0 0
        %723 = vmatprep.subr.bf16.mxu0 0
        %724 = vmatpush1.bf16.msra.mxu0 0
        %725 = vmatprep.subr.bf16.mxu0 0
        %726 = vmatpush1.bf16.msra.mxu0 0
        %727 = vmatprep.subr.bf16.mxu0 0
        %728 = vmatpush1.bf16.msra.mxu0 0
        %729 = vmatprep.subr.bf16.mxu0 0
        %730 = vmatpush1.bf16.msra.mxu0 0
        %731 = vmatprep.subr.bf16.mxu0 0
        %732 = vmatpush1.bf16.msra.mxu0 0
        %733 = vmatprep.subr.bf16.mxu0 0
        %734 = vmatpush1.bf16.msra.mxu0 0
        %735 = vmatprep.mubr.bf16.mxu0 %v701
        %736 = vmatmul.mubr.bf16.gmra.mrb[0].mxu0 %v696
        %v737 = vpop.f32.mrb[0].mxu0
        %v738 = vadd.f32 0.0, %v737
        %v739 = vpop.f32.mrb[0].mxu0
        %v740 = vadd.f32 0.0, %v739
        %v741 = vpop.f32.mrb[0].mxu0
        %v742 = vpop.f32.mrb[0].mxu0
        %743 = vdwg.mxu0
        %v746 = vcombine.low %v738, %v740
        %748 = vst [vmem:[%s272] sm:$0xff] %v746
        %s749 = sand.u32 %s181, 1
        %s750 = scalar_lea.sflag [#allocation4], %s749
        %s751 = sand.u32 %s181, 1
        %s752 = smul.addr %s751, 8
        %s753 = scalar_lea.vmem [#allocation3], %s752
        // Predicated region
        $region49: #{tpu_custom_call.1} parent=47 // pred_check
          %p754 = pneg %p191
        $region50: #{tpu_custom_call.1} parent=47 // pred_check_branch
          %756 = sbr.rel (%p754) target = $region52
        $region51: #{tpu_custom_call.1} parent=47 // pred_region
          %s757 = smul.u32 2, %s21
          %s759 = ssub.s32 128, 128
          %760 = vsyncadd %s750, %s759
          %s761 = smul.addr %s757, 64
          %s762 = scalar_lea.hbm %s7, %s761
          %s764 = sshll.u32 %s753, 4
          %s765 = int_to_ptr.vmem [resolvable:$true] %s764
          %767 = dma.vmem_to_hbm [thread:$0]  %s765, 128, %s762, %s750
        $region52: #{tpu_custom_call.1} parent=47 // pred_fallthru
          _
      $region48: #{tpu_custom_call.1} parent=5 // pred_fallthru
        _
      %p768 = scmp.le.s32.totalorder 2, %s16
      // Predicated region
      $region53: #{tpu_custom_call.1} parent=5 // pred_check
        %p769 = pneg %p768
      $region54: #{tpu_custom_call.1} parent=5 // pred_check_branch
        %771 = sbr.rel (%p769) target = $region56
      $region55: #{tpu_custom_call.1} parent=5 // pred_region
        %s772 = ssub.s32 %s16, 2
        // Predicated region
        $region57: #{tpu_custom_call.1} parent=55 // pred_check
          %p773 = pneg %p197
        $region58: #{tpu_custom_call.1} parent=55 // pred_check_branch
          %775 = sbr.rel (%p773) target = $region60
        $region59: #{tpu_custom_call.1} parent=55 // pred_region
          %s776 = sand.u32 %s182, 1
          %s777 = scalar_lea.sflag [#allocation4], %s776
          %s778 = sand.u32 %s182, 1
          %s779 = smul.addr %s778, 8
          %s780 = scalar_lea.vmem [#allocation3], %s779
          %781 = dma.done %s777, 128
        $region60: #{tpu_custom_call.1} parent=55 // pred_fallthru
          _
      $region56: #{tpu_custom_call.1} parent=5 // pred_fallthru
        _
    $region6: #{tpu_custom_call.1} parent=1 // loop_footer
      %s20 = sadd.s32 1, %s16
    $region7: #{tpu_custom_call.1} parent=1 // loop_footer_branch
      %15 = sbr.rel target = $region3
    $region8: #{tpu_custom_call.1} parent=1 // loop_exit
      _
    %782 = vsyncpa [#allocation4], 1
    %s783 = scalar_lea.sflag [#allocation4], 1
    %784 = vsyncpa %s783, 1

</llo_original>
